<compile_context>
chip_gen: v5e
topology: v5e:2x2
jax: 0.10.0
libtpu: 0.0.40
codegen_flags: <defaults>
</compile_context>

<pallas_src>
import functools

import jax
import jax.numpy as jnp
from jax.experimental import pallas as pl
from jax.experimental.pallas import tpu as pltpu


def _round_up(v, m):
    return (v + m - 1) // m * m


def _tpu_vmem_bytes():
    """Physical per-core VMEM; falls back to 64 MiB if the query is unavailable."""
    try:
        return int(getattr(pltpu.get_tpu_info(), "vmem_capacity_bytes", 64 << 20))
    except Exception:
        return 64 << 20


def _make_spec(shape, index_map, bufs=None):
    """BlockSpec with optional pipeline depth; falls back if unsupported."""
    if bufs is not None:
        try:
            return pl.BlockSpec(shape, index_map, pipeline_mode=pl.Buffered(bufs))
        except Exception:
            pass
    return pl.BlockSpec(shape, index_map)


def ff_kernel(x_ref, w1s_ref, b1s_ref, w2_ref, b2_ref, w3_ref, b3_ref, o_ref,
              *, d_in_p):
    """One row-tile of the fused FF block. Weights stay resident in VMEM."""
    x = x_ref[...]                                            # [bn, d_in_p], compute dtype

    # Layer 1 + shortcut share the same LHS -> one larger MXU op, then a
    # lane-aligned split (d_in_p is a multiple of 128).
    h0 = jnp.dot(x, w1s_ref[...], preferred_element_type=jnp.float32) + b1s_ref[...]
    h1 = jnp.maximum(h0[:, :d_in_p], 0.0).astype(x.dtype)     # block branch (ReLU)
    sc = h0[:, d_in_p:].astype(x.dtype)                       # shortcut (no ReLU), short live range

    h2 = jnp.maximum(
        jnp.dot(h1, w2_ref[...], preferred_element_type=jnp.float32) + b2_ref[...],
        0.0).astype(x.dtype)
    h3 = jnp.maximum(
        jnp.dot(h2, w3_ref[...], preferred_element_type=jnp.float32) + b3_ref[...],
        0.0)

    o_ref[...] = (h3 + sc.astype(jnp.float32)).astype(o_ref.dtype)


@functools.partial(jax.jit, static_argnames=("block_n", "compute_dtype"))
def ff_forward(x, params, block_n=256, compute_dtype=None):
    """x: [N, D_in]; params: dict of (weight [in, out], bias [1, out]) pairs.

    Matmuls run in `compute_dtype` (default: x.dtype) with f32 accumulation.
    Pass compute_dtype=jnp.bfloat16 for MXU-peak throughput on f32 inputs.
    """
    n, d_in = x.shape
    d_out = params["w2"].shape[1]
    cdt = jnp.dtype(compute_dtype or x.dtype)

    # Lane-dense feature dims.
    d_in_p = _round_up(d_in, 128)
    d_out_p = _round_up(d_out, 128)

    # Chip-aware knobs: v7x = 64 MiB VMEM & 2 TensorCores; v5e/v6e = 128 MiB & 1 TC.
    phys_vmem = _tpu_vmem_bytes()
    two_tc = phys_vmem < (100 << 20)
    vmem_cap = (52 << 20) if two_tc else (108 << 20)

    # Row tile. Single-TC chips: as big as requested (grid is a serial loop,
    # shrinking only adds per-step overhead). 2-TC chips: aim for >=4 grid
    # steps (2-3 per core) when N allows, keeping tiles >=128 rows so the MXU
    # stays well shaped and i+1 prefetch exists on each core.
    sub = 16 if cdt == jnp.dtype(jnp.bfloat16) else 8
    n_sub = _round_up(n, sub)
    bn = min(block_n, n_sub)
    if two_tc:
        split_bn = max(128, _round_up(pl.cdiv(n_sub, 4), sub))
        if n_sub >= 2 * split_bn:
            bn = min(bn, split_bn)
    bn = _round_up(bn, sub)
    n_p = _round_up(n, bn)
    grid = (n_p // bn,)

    def pad2(a, rows, cols):
        pr, pc = rows - a.shape[0], cols - a.shape[1]
        if pr == 0 and pc == 0:
            return a
        return jnp.pad(a, ((0, pr), (0, pc)))

    x_p = pad2(x, n_p, d_in_p).astype(cdt)

    f32 = jnp.float32
    w1 = pad2(params["w1"], d_in_p, d_in_p)
    ws = pad2(params["ws"], d_in_p, d_out_p)
    w1s = jnp.concatenate([w1, ws], axis=1).astype(cdt)       # [d_in_p, d_in_p + d_out_p]
    b1s = jnp.concatenate([pad2(params["b1"], 1, d_in_p),
                           pad2(params["bs"], 1, d_out_p)], axis=1).astype(f32)
    w2 = pad2(params["w2"], d_in_p, d_out_p).astype(cdt)
    b2 = pad2(params["b2"], 1, d_out_p).astype(f32)
    w3 = pad2(params["w3"], d_out_p, d_out_p).astype(cdt)
    b3 = pad2(params["b3"], 1, d_out_p).astype(f32)

    # Extra x-tile buffering only pays off in the small-dim, memory-bound
    # regime and only if there are enough grid steps to pipeline.
    x_bufs = 3 if (grid[0] >= 3 and d_in_p <= 256 and d_out_p <= 256) else None

    # VMEM budget: weights counted ONCE (Buffered(1)), x tile x2/x3, out tile
    # x2, f32 intermediates, plus headroom; capped per generation.
    isz = jnp.dtype(cdt).itemsize
    w_bytes = (w1s.size + w2.size + w3.size) * isz + (b1s.size + b2.size + b3.size) * 4
    io_bytes = (x_bufs or 2) * bn * d_in_p * isz + 2 * bn * d_out_p * isz
    acc_bytes = bn * (2 * d_in_p + 4 * d_out_p) * 4
    vmem_limit = int(min(w_bytes + io_bytes + acc_bytes + (8 << 20), vmem_cap))
    # TODO(synk): weight-output-dim tiling fallback when w_bytes > vmem_cap.

    flops = 2 * n_p * (d_in_p * (d_in_p + d_out_p)
                       + d_in_p * d_out_p + d_out_p * d_out_p)
    bytes_accessed = n_p * d_in_p * isz + w_bytes + n_p * d_out_p * isz
    try:
        cost = pl.CostEstimate(flops=flops, transcendentals=0,
                               bytes_accessed=bytes_accessed)
    except Exception:
        cost = None

    def const(a):
        nd = a.ndim
        return _make_spec(a.shape, lambda i: (0,) * nd, bufs=1)

    out_p = pl.pallas_call(
        functools.partial(ff_kernel, d_in_p=d_in_p),
        out_shape=jax.ShapeDtypeStruct((n_p, d_out_p), cdt),
        grid_spec=pltpu.PrefetchScalarGridSpec(
            num_scalar_prefetch=0,
            grid=grid,
            in_specs=[
                _make_spec((bn, d_in_p), lambda i: (i, 0), bufs=x_bufs),  # x row tile
                const(w1s), const(b1s),                                   # fused layer1 + skip
                const(w2), const(b2),
                const(w3), const(b3),
            ],
            out_specs=pl.BlockSpec((bn, d_out_p), lambda i: (i, 0)),
        ),
        compiler_params=pltpu.CompilerParams(
            dimension_semantics=("parallel",),
            vmem_limit_bytes=vmem_limit,
        ),
        cost_estimate=cost,
    )(x_p, w1s, b1s, w2, b2, w3, b3)

    if n_p == n and d_out_p == d_out:
        return out_p
    return out_p[:n, :d_out]


def init_params(key, input_dim, output_dim, dtype=jnp.float32):
    """Deterministic synthetic parameters. Weights stored as [in, out]
    (transpose of PyTorch nn.Linear's [out, in])."""
    ks = jax.random.split(key, 8)

    def lin(kw, kb, fan_in, fan_out):
        bound = 1.0 / jnp.sqrt(fan_in)
        w = jax.random.uniform(kw, (fan_in, fan_out), dtype, -bound, bound)
        b = jax.random.uniform(kb, (1, fan_out), dtype, -bound, bound)
        return w, b

    w1, b1 = lin(ks[0], ks[1], input_dim, input_dim)
    w2, b2 = lin(ks[2], ks[3], input_dim, output_dim)
    w3, b3 = lin(ks[4], ks[5], output_dim, output_dim)
    ws, bs = lin(ks[6], ks[7], input_dim, output_dim)
    return dict(w1=w1, b1=b1, w2=w2, b2=b2, w3=w3, b3=b3, ws=ws, bs=bs)


def ff_reference(x, p):
    relu = lambda v: jnp.maximum(v, 0.0)
    h = relu(x @ p["w1"] + p["b1"])
    h = relu(h @ p["w2"] + p["b2"])
    h = relu(h @ p["w3"] + p["b3"])
    return h + (x @ p["ws"] + p["bs"])


if __name__ == "__main__":
    key = jax.random.PRNGKey(0)
    k_x, k_p = jax.random.split(key)

    N, INPUT_DIM, OUTPUT_DIM = 64, 32, 16
    x = jax.random.normal(k_x, (N, INPUT_DIM), jnp.float32)
    params = init_params(k_p, INPUT_DIM, OUTPUT_DIM)

    ref = ff_reference(x, params)

    # f32 path.
    out = jax.block_until_ready(ff_forward(x, params))
    assert out.shape == (N, OUTPUT_DIM), out.shape
    assert jnp.allclose(out, ref, atol=1e-5, rtol=1e-5), "f32 mismatch vs reference"

    # Row count not a multiple of the sublane tile -> exercises pad/slice path.
    out_odd = jax.block_until_ready(ff_forward(x[:50], params))
    assert out_odd.shape == (50, OUTPUT_DIM), out_odd.shape
    assert jnp.allclose(out_odd, ref[:50], atol=1e-5, rtol=1e-5), "odd-N mismatch"

    # bf16 MXU path (bf16 inputs, f32 accumulation) — looser tolerance.
    out_bf16 = jax.block_until_ready(
        ff_forward(x, params, compute_dtype=jnp.bfloat16))
    assert out_bf16.shape == (N, OUTPUT_DIM), out_bf16.shape
    assert jnp.allclose(out_bf16.astype(jnp.float32), ref, atol=0.2, rtol=0.2), \
        "bf16 mismatch vs reference"

    print("KERNEL_OK")
</pallas_src>

<mosaic_0001>
module attributes {stable_mosaic.version = 11 : i64} {
  func.func @ff_kernel(%arg0: i32, %arg1: memref<64x128xf32, #tpu.memory_space<vmem>>, %arg2: memref<128x256xf32, #tpu.memory_space<vmem>>, %arg3: memref<1x256xf32, #tpu.memory_space<vmem>>, %arg4: memref<128x128xf32, #tpu.memory_space<vmem>>, %arg5: memref<1x128xf32, #tpu.memory_space<vmem>>, %arg6: memref<128x128xf32, #tpu.memory_space<vmem>>, %arg7: memref<1x128xf32, #tpu.memory_space<vmem>>, %arg8: memref<64x128xf32, #tpu.memory_space<vmem>>) attributes {dimension_semantics = [#tpu.dimension_semantics<parallel>], iteration_bounds = array<i64: 1>, scalar_prefetch = 0 : i64, scratch_operands = 0 : i64, tpu.core_type = #tpu.core_type<tc>, window_params = [{transform_indices = @transform_0, window_bounds = array<i64: 64, 128>}, {pipeline_mode = #tpu.pipeline_mode<synchronous>, transform_indices = @transform_1, window_bounds = array<i64: 128, 256>}, {pipeline_mode = #tpu.pipeline_mode<synchronous>, transform_indices = @transform_2, window_bounds = array<i64: 1, 256>}, {pipeline_mode = #tpu.pipeline_mode<synchronous>, transform_indices = @transform_3, window_bounds = array<i64: 128, 128>}, {pipeline_mode = #tpu.pipeline_mode<synchronous>, transform_indices = @transform_4, window_bounds = array<i64: 1, 128>}, {pipeline_mode = #tpu.pipeline_mode<synchronous>, transform_indices = @transform_5, window_bounds = array<i64: 128, 128>}, {pipeline_mode = #tpu.pipeline_mode<synchronous>, transform_indices = @transform_6, window_bounds = array<i64: 1, 128>}, {transform_indices = @transform_7, window_bounds = array<i64: 64, 128>}]} {
    %c0 = arith.constant 0 : index
    %c0_0 = arith.constant 0 : index
    %0 = vector.load %arg1[%c0, %c0_0] : memref<64x128xf32, #tpu.memory_space<vmem>>, vector<64x128xf32>
    %c0_1 = arith.constant 0 : index
    %c0_2 = arith.constant 0 : index
    %1 = vector.load %arg2[%c0_1, %c0_2] : memref<128x256xf32, #tpu.memory_space<vmem>>, vector<128x256xf32>
    %cst = arith.constant dense<0.000000e+00> : vector<64x256xf32>
    %2 = tpu.matmul %0, %1, %cst {dimension_numbers = #tpu.dot_dimension_numbers<[1], [0], [0], [1], [0, 0, 1, 1], [], []>} : vector<64x128xf32>, vector<128x256xf32>, vector<64x256xf32> -> vector<64x256xf32>
    %c0_3 = arith.constant 0 : index
    %c0_4 = arith.constant 0 : index
    %3 = vector.load %arg3[%c0_3, %c0_4] : memref<1x256xf32, #tpu.memory_space<vmem>>, vector<1x256xf32>
    %4 = vector.broadcast %3 : vector<1x256xf32> to vector<64x256xf32>
    %5 = arith.addf %2, %4 : vector<64x256xf32>
    %6 = vector.extract_strided_slice %5 {offsets = [0, 0], sizes = [64, 128], strides = [1, 1]} : vector<64x256xf32> to vector<64x128xf32>
    %cst_5 = arith.constant 0.000000e+00 : f32
    %7 = vector.broadcast %cst_5 : f32 to vector<64x128xf32>
    %8 = arith.maximumf %6, %7 : vector<64x128xf32>
    %9 = vector.extract_strided_slice %5 {offsets = [0, 128], sizes = [64, 128], strides = [1, 1]} : vector<64x256xf32> to vector<64x128xf32>
    %c0_6 = arith.constant 0 : index
    %c0_7 = arith.constant 0 : index
    %10 = vector.load %arg4[%c0_6, %c0_7] : memref<128x128xf32, #tpu.memory_space<vmem>>, vector<128x128xf32>
    %cst_8 = arith.constant dense<0.000000e+00> : vector<64x128xf32>
    %11 = tpu.matmul %8, %10, %cst_8 {dimension_numbers = #tpu.dot_dimension_numbers<[1], [0], [0], [1], [0, 0, 1, 1], [], []>} : vector<64x128xf32>, vector<128x128xf32>, vector<64x128xf32> -> vector<64x128xf32>
    %c0_9 = arith.constant 0 : index
    %c0_10 = arith.constant 0 : index
    %12 = vector.load %arg5[%c0_9, %c0_10] : memref<1x128xf32, #tpu.memory_space<vmem>>, vector<1x128xf32>
    %13 = vector.broadcast %12 : vector<1x128xf32> to vector<64x128xf32>
    %14 = arith.addf %11, %13 : vector<64x128xf32>
    %cst_11 = arith.constant 0.000000e+00 : f32
    %15 = vector.broadcast %cst_11 : f32 to vector<64x128xf32>
    %16 = arith.maximumf %14, %15 : vector<64x128xf32>
    %c0_12 = arith.constant 0 : index
    %c0_13 = arith.constant 0 : index
    %17 = vector.load %arg6[%c0_12, %c0_13] : memref<128x128xf32, #tpu.memory_space<vmem>>, vector<128x128xf32>
    %cst_14 = arith.constant dense<0.000000e+00> : vector<64x128xf32>
    %18 = tpu.matmul %16, %17, %cst_14 {dimension_numbers = #tpu.dot_dimension_numbers<[1], [0], [0], [1], [0, 0, 1, 1], [], []>} : vector<64x128xf32>, vector<128x128xf32>, vector<64x128xf32> -> vector<64x128xf32>
    %c0_15 = arith.constant 0 : index
    %c0_16 = arith.constant 0 : index
    %19 = vector.load %arg7[%c0_15, %c0_16] : memref<1x128xf32, #tpu.memory_space<vmem>>, vector<1x128xf32>
    %20 = vector.broadcast %19 : vector<1x128xf32> to vector<64x128xf32>
    %21 = arith.addf %18, %20 : vector<64x128xf32>
    %cst_17 = arith.constant 0.000000e+00 : f32
    %22 = vector.broadcast %cst_17 : f32 to vector<64x128xf32>
    %23 = arith.maximumf %21, %22 : vector<64x128xf32>
    %24 = arith.addf %23, %9 : vector<64x128xf32>
    %c0_18 = arith.constant 0 : index
    %c0_19 = arith.constant 0 : index
    %25 = vector.load %arg8[%c0_18, %c0_19] : memref<64x128xf32, #tpu.memory_space<vmem>>, vector<64x128xf32>
    tpu.vector_store %arg8[%c0_18, %c0_19], %24 {strides = array<i32>} : memref<64x128xf32, #tpu.memory_space<vmem>>, vector<64x128xf32>,
    return
  }
  func.func @transform_0(%arg0: i32) -> (i32, i32) {
    %c0_i32 = arith.constant 0 : i32
    %c0_i32_0 = arith.constant 0 : i32
    return %arg0, %c0_i32 : i32, i32
  }
  func.func @transform_1(%arg0: i32) -> (i32, i32) {
    %c0_i32 = arith.constant 0 : i32
    %c0_i32_0 = arith.constant 0 : i32
    %c0_i32_1 = arith.constant 0 : i32
    return %c0_i32, %c0_i32_0 : i32, i32
  }
  func.func @transform_2(%arg0: i32) -> (i32, i32) {
    %c0_i32 = arith.constant 0 : i32
    %c0_i32_0 = arith.constant 0 : i32
    %c0_i32_1 = arith.constant 0 : i32
    return %c0_i32, %c0_i32_0 : i32, i32
  }
  func.func @transform_3(%arg0: i32) -> (i32, i32) {
    %c0_i32 = arith.constant 0 : i32
    %c0_i32_0 = arith.constant 0 : i32
    %c0_i32_1 = arith.constant 0 : i32
    return %c0_i32, %c0_i32_0 : i32, i32
  }
  func.func @transform_4(%arg0: i32) -> (i32, i32) {
    %c0_i32 = arith.constant 0 : i32
    %c0_i32_0 = arith.constant 0 : i32
    %c0_i32_1 = arith.constant 0 : i32
    return %c0_i32, %c0_i32_0 : i32, i32
  }
  func.func @transform_5(%arg0: i32) -> (i32, i32) {
    %c0_i32 = arith.constant 0 : i32
    %c0_i32_0 = arith.constant 0 : i32
    %c0_i32_1 = arith.constant 0 : i32
    return %c0_i32, %c0_i32_0 : i32, i32
  }
  func.func @transform_6(%arg0: i32) -> (i32, i32) {
    %c0_i32 = arith.constant 0 : i32
    %c0_i32_0 = arith.constant 0 : i32
    %c0_i32_1 = arith.constant 0 : i32
    return %c0_i32, %c0_i32_0 : i32, i32
  }
  func.func @transform_7(%arg0: i32) -> (i32, i32) {
    %c0_i32 = arith.constant 0 : i32
    %c0_i32_0 = arith.constant 0 : i32
    return %arg0, %c0_i32 : i32, i32
  }
}

</mosaic_0001>

<llo_original>
// kernel: ff_forward.1
$region0: #{ff_forward.1}
  #allocation0 [shape = 'u32[]', space=smem, size = 0x4, offset = 0x4, fixed_abs, tag = 'smem constant byte address 0x4 - core index']
  #allocation1 [shape = 'u32[72,128]{1,0:T(1,128)}', space=vmem, size = 0x9000, scoped, tag = 'internal scratch']
  %s0 = inlined_call_operand.vmem [shape: f32[64,128], index: 0, kind: input, shape index: {}]
  %s1 = inlined_call_operand.vmem [shape: f32[128,256], index: 1, kind: input, shape index: {}]
  %s2 = inlined_call_operand.vmem [shape: f32[1,256], index: 2, kind: input, shape index: {}]
  %s3 = inlined_call_operand.vmem [shape: f32[128,128], index: 3, kind: input, shape index: {}]
  %s4 = inlined_call_operand.vmem [shape: f32[1,128], index: 4, kind: input, shape index: {}]
  %s5 = inlined_call_operand.vmem [shape: f32[128,128], index: 5, kind: input, shape index: {}]
  %s6 = inlined_call_operand.vmem [shape: f32[1,128], index: 6, kind: input, shape index: {}]
  %s7 = inlined_call_operand.vmem [shape: f32[64,128], index: 7, kind: output, shape index: {}]
  %s8 = sld [smem:[#allocation0]]
  $region38: #{ff_forward.1} parent=0
    _
  %s10 = ssub.s32 1, %s8
  %s11 = scalar_select 0, %s10, %s8
  // Predicated region
  $region2: #{ff_forward.1} parent=0 // pred_check
    _
  $region3: #{ff_forward.1} parent=0 // pred_check_branch
    %13 = sbr.rel (0) target = $region5
  $region4: #{ff_forward.1} parent=0 // pred_region
    _
  $region5: #{ff_forward.1} parent=0 // pred_fallthru
    _
  // Predicated region
  $region6: #{ff_forward.1} parent=0 // pred_check
    _
  $region7: #{ff_forward.1} parent=0 // pred_check_branch
    %15 = sbr.rel (0) target = $region9
  $region8: #{ff_forward.1} parent=0 // pred_region
    _
  $region9: #{ff_forward.1} parent=0 // pred_fallthru
    _
  // Predicated region
  $region10: #{ff_forward.1} parent=0 // pred_check
    _
  $region11: #{ff_forward.1} parent=0 // pred_check_branch
    %17 = sbr.rel (0) target = $region13
  $region12: #{ff_forward.1} parent=0 // pred_region
    _
  $region13: #{ff_forward.1} parent=0 // pred_fallthru
    _
  // Predicated region
  $region14: #{ff_forward.1} parent=0 // pred_check
    _
  $region15: #{ff_forward.1} parent=0 // pred_check_branch
    %19 = sbr.rel (0) target = $region17
  $region16: #{ff_forward.1} parent=0 // pred_region
    _
  $region17: #{ff_forward.1} parent=0 // pred_fallthru
    _
  // Predicated region
  $region18: #{ff_forward.1} parent=0 // pred_check
    _
  $region19: #{ff_forward.1} parent=0 // pred_check_branch
    %21 = sbr.rel (0) target = $region21
  $region20: #{ff_forward.1} parent=0 // pred_region
    _
  $region21: #{ff_forward.1} parent=0 // pred_fallthru
    _
  // Predicated region
  $region22: #{ff_forward.1} parent=0 // pred_check
    _
  $region23: #{ff_forward.1} parent=0 // pred_check_branch
    %23 = sbr.rel (0) target = $region25
  $region24: #{ff_forward.1} parent=0 // pred_region
    _
  $region25: #{ff_forward.1} parent=0 // pred_fallthru
    _
  // Predicated region
  $region26: #{ff_forward.1} parent=0 // pred_check
    _
  $region27: #{ff_forward.1} parent=0 // pred_check_branch
    %25 = sbr.rel (0) target = $region29
  $region28: #{ff_forward.1} parent=0 // pred_region
    _
  $region29: #{ff_forward.1} parent=0 // pred_fallthru
    _
  %v26 = vld [vmem:[%s0] sm:$0xff]
  %v27 = vld [vmem:[%s0 + $0x8] sm:$0xff]
  %v28 = vld [vmem:[%s0 + $0x10] sm:$0xff]
  %v29 = vld [vmem:[%s0 + $0x18] sm:$0xff]
  %v30 = vld [vmem:[%s0 + $0x20] sm:$0xff]
  %v31 = vld [vmem:[%s0 + $0x28] sm:$0xff]
  %v32 = vld [vmem:[%s0 + $0x30] sm:$0xff]
  %v33 = vld [vmem:[%s0 + $0x38] sm:$0xff]
  %v34 = vld [vmem:[%s1] sm:$0xff]
  %v35 = vld [vmem:[%s1 + $0x8] sm:$0xff]
  %v36 = vld [vmem:[%s1 + $0x10] sm:$0xff]
  %v37 = vld [vmem:[%s1 + $0x18] sm:$0xff]
  %v38 = vld [vmem:[%s1 + $0x20] sm:$0xff]
  %v39 = vld [vmem:[%s1 + $0x28] sm:$0xff]
  %v40 = vld [vmem:[%s1 + $0x30] sm:$0xff]
  %v41 = vld [vmem:[%s1 + $0x38] sm:$0xff]
  %v42 = vld [vmem:[%s1 + $0x40] sm:$0xff]
  %v43 = vld [vmem:[%s1 + $0x48] sm:$0xff]
  %v44 = vld [vmem:[%s1 + $0x50] sm:$0xff]
  %v45 = vld [vmem:[%s1 + $0x58] sm:$0xff]
  %v46 = vld [vmem:[%s1 + $0x60] sm:$0xff]
  %v47 = vld [vmem:[%s1 + $0x68] sm:$0xff]
  %v48 = vld [vmem:[%s1 + $0x70] sm:$0xff]
  %v49 = vld [vmem:[%s1 + $0x78] sm:$0xff]
  %v50 = vld [vmem:[%s1 + $0x80] sm:$0xff]
  %v51 = vld [vmem:[%s1 + $0x88] sm:$0xff]
  %v52 = vld [vmem:[%s1 + $0x90] sm:$0xff]
  %v53 = vld [vmem:[%s1 + $0x98] sm:$0xff]
  %v54 = vld [vmem:[%s1 + $0xa0] sm:$0xff]
  %v55 = vld [vmem:[%s1 + $0xa8] sm:$0xff]
  %v56 = vld [vmem:[%s1 + $0xb0] sm:$0xff]
  %v57 = vld [vmem:[%s1 + $0xb8] sm:$0xff]
  %v58 = vld [vmem:[%s1 + $0xc0] sm:$0xff]
  %v59 = vld [vmem:[%s1 + $0xc8] sm:$0xff]
  %v60 = vld [vmem:[%s1 + $0xd0] sm:$0xff]
  %v61 = vld [vmem:[%s1 + $0xd8] sm:$0xff]
  %v62 = vld [vmem:[%s1 + $0xe0] sm:$0xff]
  %v63 = vld [vmem:[%s1 + $0xe8] sm:$0xff]
  %v64 = vld [vmem:[%s1 + $0xf0] sm:$0xff]
  %v65 = vld [vmem:[%s1 + $0xf8] sm:$0xff]
  %v66 = vld [vmem:[%s2] sm:$0x3]
  %v68 = vperm.slane %v66, 0
  %v69 = vperm.slane %v66, 1
  %72 = vmatpush.msra.mxu0 %v64
  %73 = vmatpush.msra.mxu0 %v62
  %74 = vmatpush.msra.mxu0 %v60
  %75 = vmatpush.msra.mxu0 %v58
  %76 = vmatpush.msra.mxu0 %v56
  %77 = vmatpush.msra.mxu0 %v54
  %78 = vmatpush.msra.mxu0 %v52
  %79 = vmatpush.msra.mxu0 %v50
  %80 = vmatpush.msra.mxu0 %v48
  %81 = vmatpush.msra.mxu0 %v46
  %82 = vmatpush.msra.mxu0 %v44
  %83 = vmatpush.msra.mxu0 %v42
  %84 = vmatpush.msra.mxu0 %v40
  %85 = vmatpush.msra.mxu0 %v38
  %86 = vmatpush.msra.mxu0 %v36
  %87 = vmatpush.msra.mxu0 %v34
  %88 = vmatmul.f32.gmra.mxu0 %v26
  %v89 = vpop.f32.mrf.mxu0
  %v90 = vadd.f32 %v68, %v89
  %91 = vmatmul.f32.gmra.mxu0 %v27
  %v92 = vpop.f32.mrf.mxu0
  %v93 = vadd.f32 %v68, %v92
  %94 = vmatmul.f32.gmra.mxu0 %v28
  %v95 = vpop.f32.mrf.mxu0
  %v96 = vadd.f32 %v68, %v95
  %97 = vmatmul.f32.gmra.mxu0 %v29
  %v98 = vpop.f32.mrf.mxu0
  %v99 = vadd.f32 %v68, %v98
  %100 = vmatmul.f32.gmra.mxu0 %v30
  %v101 = vpop.f32.mrf.mxu0
  %v102 = vadd.f32 %v68, %v101
  %103 = vmatmul.f32.gmra.mxu0 %v31
  %v104 = vpop.f32.mrf.mxu0
  %v105 = vadd.f32 %v68, %v104
  %106 = vmatmul.f32.gmra.mxu0 %v32
  %v107 = vpop.f32.mrf.mxu0
  %v108 = vadd.f32 %v68, %v107
  %109 = vmatmul.f32.gmra.mxu0 %v33
  %v110 = vpop.f32.mrf.mxu0
  %v111 = vadd.f32 %v68, %v110
  %112 = vdwg.mxu0
  %113 = vmatpush.msra.mxu0 %v65
  %114 = vmatpush.msra.mxu0 %v63
  %115 = vmatpush.msra.mxu0 %v61
  %116 = vmatpush.msra.mxu0 %v59
  %117 = vmatpush.msra.mxu0 %v57
  %118 = vmatpush.msra.mxu0 %v55
  %119 = vmatpush.msra.mxu0 %v53
  %120 = vmatpush.msra.mxu0 %v51
  %121 = vmatpush.msra.mxu0 %v49
  %122 = vmatpush.msra.mxu0 %v47
  %123 = vmatpush.msra.mxu0 %v45
  %124 = vmatpush.msra.mxu0 %v43
  %125 = vmatpush.msra.mxu0 %v41
  %126 = vmatpush.msra.mxu0 %v39
  %127 = vmatpush.msra.mxu0 %v37
  %128 = vmatpush.msra.mxu0 %v35
  %129 = vmatmul.f32.gmra.mxu0 %v26
  %v130 = vpop.f32.mrf.mxu0
  %v131 = vadd.f32 %v69, %v130
  %132 = vmatmul.f32.gmra.mxu0 %v27
  %v133 = vpop.f32.mrf.mxu0
  %v134 = vadd.f32 %v69, %v133
  %135 = vmatmul.f32.gmra.mxu0 %v28
  %v136 = vpop.f32.mrf.mxu0
  %v137 = vadd.f32 %v69, %v136
  %138 = vmatmul.f32.gmra.mxu0 %v29
  %v139 = vpop.f32.mrf.mxu0
  %v140 = vadd.f32 %v69, %v139
  %141 = vmatmul.f32.gmra.mxu0 %v30
  %v142 = vpop.f32.mrf.mxu0
  %v143 = vadd.f32 %v69, %v142
  %144 = vmatmul.f32.gmra.mxu0 %v31
  %v145 = vpop.f32.mrf.mxu0
  %v146 = vadd.f32 %v69, %v145
  %147 = vmatmul.f32.gmra.mxu0 %v32
  %v148 = vpop.f32.mrf.mxu0
  %v149 = vadd.f32 %v69, %v148
  %150 = vmatmul.f32.gmra.mxu0 %v33
  %v151 = vpop.f32.mrf.mxu0
  %v152 = vadd.f32 %v69, %v151
  %153 = vdwg.mxu0
  %v154 = vmax.f32 %v90, 0.0
  %v155 = vmax.f32 %v93, 0.0
  %v156 = vmax.f32 %v96, 0.0
  %v157 = vmax.f32 %v99, 0.0
  %v158 = vmax.f32 %v102, 0.0
  %v159 = vmax.f32 %v105, 0.0
  %v160 = vmax.f32 %v108, 0.0
  %v161 = vmax.f32 %v111, 0.0
  %v162 = vld [vmem:[%s3] sm:$0xff]
  %v163 = vld [vmem:[%s3 + $0x8] sm:$0xff]
  %v164 = vld [vmem:[%s3 + $0x10] sm:$0xff]
  %v165 = vld [vmem:[%s3 + $0x18] sm:$0xff]
  %v166 = vld [vmem:[%s3 + $0x20] sm:$0xff]
  %v167 = vld [vmem:[%s3 + $0x28] sm:$0xff]
  %v168 = vld [vmem:[%s3 + $0x30] sm:$0xff]
  %v169 = vld [vmem:[%s3 + $0x38] sm:$0xff]
  %v170 = vld [vmem:[%s3 + $0x40] sm:$0xff]
  %v171 = vld [vmem:[%s3 + $0x48] sm:$0xff]
  %v172 = vld [vmem:[%s3 + $0x50] sm:$0xff]
  %v173 = vld [vmem:[%s3 + $0x58] sm:$0xff]
  %v174 = vld [vmem:[%s3 + $0x60] sm:$0xff]
  %v175 = vld [vmem:[%s3 + $0x68] sm:$0xff]
  %v176 = vld [vmem:[%s3 + $0x70] sm:$0xff]
  %v177 = vld [vmem:[%s3 + $0x78] sm:$0xff]
  %v178 = vld [vmem:[%s4] sm:$0x1]
  %v180 = vperm.slane %v178, 0
  %182 = vmatpush.msra.mxu0 %v177
  %183 = vmatpush.msra.mxu0 %v176
  %184 = vmatpush.msra.mxu0 %v175
  %185 = vmatpush.msra.mxu0 %v174
  %186 = vmatpush.msra.mxu0 %v173
  %187 = vmatpush.msra.mxu0 %v172
  %188 = vmatpush.msra.mxu0 %v171
  %189 = vmatpush.msra.mxu0 %v170
  %190 = vmatpush.msra.mxu0 %v169
  %191 = vmatpush.msra.mxu0 %v168
  %192 = vmatpush.msra.mxu0 %v167
  %193 = vmatpush.msra.mxu0 %v166
  %194 = vmatpush.msra.mxu0 %v165
  %195 = vmatpush.msra.mxu0 %v164
  %196 = vmatpush.msra.mxu0 %v163
  %197 = vmatpush.msra.mxu0 %v162
  %198 = vmatmul.f32.gmra.mxu0 %v154
  %v199 = vpop.f32.mrf.mxu0
  %v200 = vadd.f32 %v180, %v199
  %201 = vmatmul.f32.gmra.mxu0 %v155
  %v202 = vpop.f32.mrf.mxu0
  %v203 = vadd.f32 %v180, %v202
  %204 = vmatmul.f32.gmra.mxu0 %v156
  %v205 = vpop.f32.mrf.mxu0
  %v206 = vadd.f32 %v180, %v205
  %207 = vmatmul.f32.gmra.mxu0 %v157
  %v208 = vpop.f32.mrf.mxu0
  %v209 = vadd.f32 %v180, %v208
  %210 = vmatmul.f32.gmra.mxu0 %v158
  %v211 = vpop.f32.mrf.mxu0
  %v212 = vadd.f32 %v180, %v211
  %213 = vmatmul.f32.gmra.mxu0 %v159
  %v214 = vpop.f32.mrf.mxu0
  %v215 = vadd.f32 %v180, %v214
  %216 = vmatmul.f32.gmra.mxu0 %v160
  %v217 = vpop.f32.mrf.mxu0
  %v218 = vadd.f32 %v180, %v217
  %219 = vmatmul.f32.gmra.mxu0 %v161
  %v220 = vpop.f32.mrf.mxu0
  %v221 = vadd.f32 %v180, %v220
  %222 = vdwg.mxu0
  %v223 = vmax.f32 %v200, 0.0
  %v224 = vmax.f32 %v203, 0.0
  %v225 = vmax.f32 %v206, 0.0
  %v226 = vmax.f32 %v209, 0.0
  %v227 = vmax.f32 %v212, 0.0
  %v228 = vmax.f32 %v215, 0.0
  %v229 = vmax.f32 %v218, 0.0
  %v230 = vmax.f32 %v221, 0.0
  %v231 = vld [vmem:[%s5] sm:$0xff]
  %v232 = vld [vmem:[%s5 + $0x8] sm:$0xff]
  %v233 = vld [vmem:[%s5 + $0x10] sm:$0xff]
  %v234 = vld [vmem:[%s5 + $0x18] sm:$0xff]
  %v235 = vld [vmem:[%s5 + $0x20] sm:$0xff]
  %v236 = vld [vmem:[%s5 + $0x28] sm:$0xff]
  %v237 = vld [vmem:[%s5 + $0x30] sm:$0xff]
  %v238 = vld [vmem:[%s5 + $0x38] sm:$0xff]
  %v239 = vld [vmem:[%s5 + $0x40] sm:$0xff]
  %v240 = vld [vmem:[%s5 + $0x48] sm:$0xff]
  %v241 = vld [vmem:[%s5 + $0x50] sm:$0xff]
  %v242 = vld [vmem:[%s5 + $0x58] sm:$0xff]
  %v243 = vld [vmem:[%s5 + $0x60] sm:$0xff]
  %v244 = vld [vmem:[%s5 + $0x68] sm:$0xff]
  %v245 = vld [vmem:[%s5 + $0x70] sm:$0xff]
  %v246 = vld [vmem:[%s5 + $0x78] sm:$0xff]
  %v247 = vld [vmem:[%s6] sm:$0x1]
  %v249 = vperm.slane %v247, 0
  %251 = vmatpush.msra.mxu0 %v246
  %252 = vmatpush.msra.mxu0 %v245
  %253 = vmatpush.msra.mxu0 %v244
  %254 = vmatpush.msra.mxu0 %v243
  %255 = vmatpush.msra.mxu0 %v242
  %256 = vmatpush.msra.mxu0 %v241
  %257 = vmatpush.msra.mxu0 %v240
  %258 = vmatpush.msra.mxu0 %v239
  %259 = vmatpush.msra.mxu0 %v238
  %260 = vmatpush.msra.mxu0 %v237
  %261 = vmatpush.msra.mxu0 %v236
  %262 = vmatpush.msra.mxu0 %v235
  %263 = vmatpush.msra.mxu0 %v234
  %264 = vmatpush.msra.mxu0 %v233
  %265 = vmatpush.msra.mxu0 %v232
  %266 = vmatpush.msra.mxu0 %v231
  %267 = vmatmul.f32.gmra.mxu0 %v223
  %v268 = vpop.f32.mrf.mxu0
  %v269 = vadd.f32 %v249, %v268
  %270 = vmatmul.f32.gmra.mxu0 %v224
  %v271 = vpop.f32.mrf.mxu0
  %v272 = vadd.f32 %v249, %v271
  %273 = vmatmul.f32.gmra.mxu0 %v225
  %v274 = vpop.f32.mrf.mxu0
  %v275 = vadd.f32 %v249, %v274
  %276 = vmatmul.f32.gmra.mxu0 %v226
  %v277 = vpop.f32.mrf.mxu0
  %v278 = vadd.f32 %v249, %v277
  %279 = vmatmul.f32.gmra.mxu0 %v227
  %v280 = vpop.f32.mrf.mxu0
  %v281 = vadd.f32 %v249, %v280
  %282 = vmatmul.f32.gmra.mxu0 %v228
  %v283 = vpop.f32.mrf.mxu0
  %v284 = vadd.f32 %v249, %v283
  %285 = vmatmul.f32.gmra.mxu0 %v229
  %v286 = vpop.f32.mrf.mxu0
  %v287 = vadd.f32 %v249, %v286
  %288 = vmatmul.f32.gmra.mxu0 %v230
  %v289 = vpop.f32.mrf.mxu0
  %v290 = vadd.f32 %v249, %v289
  %291 = vdwg.mxu0
  %v292 = vmax.f32 %v269, 0.0
  %v293 = vmax.f32 %v272, 0.0
  %v294 = vmax.f32 %v275, 0.0
  %v295 = vmax.f32 %v278, 0.0
  %v296 = vmax.f32 %v281, 0.0
  %v297 = vmax.f32 %v284, 0.0
  %v298 = vmax.f32 %v287, 0.0
  %v299 = vmax.f32 %v290, 0.0
  %v300 = vadd.f32 %v292, %v131
  %v301 = vadd.f32 %v293, %v134
  %v302 = vadd.f32 %v294, %v137
  %v303 = vadd.f32 %v295, %v140
  %v304 = vadd.f32 %v296, %v143
  %v305 = vadd.f32 %v297, %v146
  %v306 = vadd.f32 %v298, %v149
  %v307 = vadd.f32 %v299, %v152
  %308 = vst [vmem:[%s7] sm:$0xff] %v300
  %309 = vst [vmem:[%s7 + $0x8] sm:$0xff] %v301
  %310 = vst [vmem:[%s7 + $0x10] sm:$0xff] %v302
  %311 = vst [vmem:[%s7 + $0x18] sm:$0xff] %v303
  %312 = vst [vmem:[%s7 + $0x20] sm:$0xff] %v304
  %313 = vst [vmem:[%s7 + $0x28] sm:$0xff] %v305
  %314 = vst [vmem:[%s7 + $0x30] sm:$0xff] %v306
  %315 = vst [vmem:[%s7 + $0x38] sm:$0xff] %v307
  // Predicated region
  $region30: #{ff_forward.1} parent=0 // pred_check
    _
  $region31: #{ff_forward.1} parent=0 // pred_check_branch
    %317 = sbr.rel (0) target = $region33
  $region32: #{ff_forward.1} parent=0 // pred_region
    _
  $region33: #{ff_forward.1} parent=0 // pred_fallthru
    _
  // Predicated region
  $region34: #{ff_forward.1} parent=0 // pred_check
    _
  $region35: #{ff_forward.1} parent=0 // pred_check_branch
    %319 = sbr.rel (0) target = $region37
  $region36: #{ff_forward.1} parent=0 // pred_region
    _
  $region37: #{ff_forward.1} parent=0 // pred_fallthru
    _

</llo_original>
